<compile_context>
chip_gen: v7x
topology: tpu7x:2x2x1
jax: 0.10.0
libtpu: 0.0.40
codegen_flags: <defaults>
</compile_context>

<pallas_src>
import jax
import jax.numpy as jnp
from jax.experimental import pallas as pl
from jax.experimental.pallas import tpu as pltpu


def _round_up(x, m):
    return ((x + m - 1) // m) * m


def _num_tensorcores_per_chip():
    """Best-effort TensorCores-per-chip (v7x: 2, v5e/v6e: 1). Perf-only hint."""
    try:
        kind = jax.devices()[0].device_kind.lower()
    except Exception:
        return 1
    return 2 if ("7x" in kind or "v7" in kind) else 1


# ---------------------------------------------------------------------------
# Pallas kernel: full IDM-Koopman forward for one tile of whole sequences.
# x_ref holds `rows = bt*Tp` flattened observation rows (original dtype);
# out_ref is one lane-dense [rows, W_out] slab:  [ action | z_pred | pad ].
# ---------------------------------------------------------------------------
def _idm_kernel(x_ref, we1_ref, be1_ref, wzz_ref, bzz_ref,
                wa1a_ref, wa1b_ref, ba1_ref, wa2_ref, ba2_ref, out_ref):
    f32 = jnp.float32
    cdt = we1_ref.dtype              # MXU operand dtype (bf16 or f32)
    w_out = out_ref.shape[1]

    # Shared encoder: every observation row encoded exactly once.  The cast to
    # the MXU operand dtype happens here (no wrapper-side pre-pass over HBM).
    x = x_ref[...].astype(cdt)                                      # (R, D)
    h = jnp.dot(x, we1_ref[...], preferred_element_type=f32) + be1_ref[...]
    h = jnp.maximum(h, 0.0)                                         # (R, H) f32

    # Fused 2nd layer: one MXU pass emits z_t AND the Koopman rollout
    # z_pred = z_t @ K, already scattered into their final output lanes.
    zz = (jnp.dot(h.astype(cdt), wzz_ref[...], preferred_element_type=f32)
          + bzz_ref[...])                                           # (R, Wint) f32
    zzc = zz.astype(cdt)

    # Inverse-dynamics head.  The split, zero-padded W_a1 halves read the z_t
    # lanes straight out of zz; the z_{t+1} contribution is the SAME partial
    # product shifted up one row.  The wrapped last row only feeds output rows
    # with t >= T-1, which the wrapper discards.
    p_a = jnp.dot(zzc, wa1a_ref[...], preferred_element_type=f32)   # (R, H)
    p_b = jnp.dot(zzc, wa1b_ref[...], preferred_element_type=f32)   # (R, H)
    p_b = jnp.roll(p_b, shift=-1, axis=0)    # row r <- row r+1 (wrap is discarded)
    h2 = jnp.maximum(p_a + p_b + ba1_ref[...], 0.0)                 # (R, H) f32

    # tanh action head lands in lanes [0, A); adding zz drops z_pred into its
    # lanes (tanh(0)=0 elsewhere).  Only the leading w_out lanes are stored,
    # as bf16 by default, so dead z lanes never touch HBM.
    acts = jnp.tanh(jnp.dot(h2.astype(cdt), wa2_ref[...],
                            preferred_element_type=f32) + ba2_ref[...])
    out_ref[...] = (acts + zz[:, :w_out]).astype(out_ref.dtype)


# ---------------------------------------------------------------------------
# One-time weight folding / packing (hoisted out of the per-call wrapper).
# ---------------------------------------------------------------------------
def prepare_idm_weights(params, *, compute_dtype=jnp.bfloat16):
    f32 = jnp.float32
    cdt = jnp.dtype(compute_dtype)
    D, H = params["w_e1"].shape
    L = params["koopman"].shape[0]
    A = params["w_a2"].shape[1]

    # Lane layouts:  internal slab [act | z_pred | z | 0]  (width w_int)
    #                stored   slab [act | z_pred | ...  ]  (width w_out <= w_int)
    w_int = _round_up(A + 2 * L, 128)
    w_out = _round_up(A + L, 128)
    zp_lo, z_lo = A, A + L

    # Fold the Koopman operator into the encoder's 2nd layer and scatter
    # z / z_pred directly into their lane slots (zero-padded N is free).
    w_e2, b_e2, K = params["w_e2"], params["b_e2"], params["koopman"]
    w_zz = (jnp.zeros((H, w_int), f32)
            .at[:, zp_lo:zp_lo + L].set(w_e2 @ K)
            .at[:, z_lo:z_lo + L].set(w_e2))
    b_zz = (jnp.zeros((1, w_int), f32)
            .at[:, zp_lo:zp_lo + L].set(b_e2 @ K)
            .at[:, z_lo:z_lo + L].set(b_e2))
    # Split W_a1 so the kernel never concatenates [z_t ; z_{t+1}]; lift each
    # half so it reads the z lanes straight out of the zz slab.
    wa1_a = jnp.zeros((w_int, H), f32).at[z_lo:z_lo + L, :].set(params["w_a1"][:L])
    wa1_b = jnp.zeros((w_int, H), f32).at[z_lo:z_lo + L, :].set(params["w_a1"][L:])
    # Action head writes into lanes [0, A) of the stored slab.
    w_a2 = jnp.zeros((H, w_out), f32).at[:, :A].set(params["w_a2"])
    b_a2 = jnp.zeros((1, w_out), f32).at[:, :A].set(params["b_a2"])

    # Matmul operands in compute_dtype (bf16 MXU on all generations); biases
    # stay f32 so every elementwise op (adds / relu / tanh) runs in f32.
    weights = (params["w_e1"].astype(cdt), params["b_e1"].astype(f32),
               w_zz.astype(cdt), b_zz.astype(f32),
               wa1_a.astype(cdt), wa1_b.astype(cdt), params["b_a1"].astype(f32),
               w_a2.astype(cdt), b_a2.astype(f32))
    meta = dict(obs_dim=D, hidden=H, latent=L, action_dim=A, w_out=w_out)
    return weights, meta


# ---------------------------------------------------------------------------
# Forward wrapper: row tiling, BlockSpecs, output unpacking.
# ---------------------------------------------------------------------------
def idm_cotrain_forward(nobs, prepared, *, out_dtype=jnp.bfloat16,
                        target_rows=2048):
    """nobs: [B, T, obs_dim] -> (actions [B, T-1, A], z_pred [B, T-1, L])."""
    weights, meta = prepared
    B, T, D = nobs.shape
    assert T >= 2 and D == meta["obs_dim"]
    A, L, w_out = meta["action_dim"], meta["latent"], meta["w_out"]

    # Tile rows = whole (padded) sequences so the z_{t+1} row-shift never
    # crosses a kept row, and each observation is read from HBM exactly once.
    Tp = _round_up(T, 8)                               # f32 sublane tile only
    bt = max(1, min(B, target_rows // Tp))             # sequences per grid step
    n_tc = _num_tensorcores_per_chip()
    if n_tc > 1 and B >= n_tc:
        bt = min(bt, max(1, B // n_tc))                # >= n_tc grid steps (v7x)
    # 16-bit blocks (bf16 output and/or bf16 nobs) need 16-row-aligned blocks
    # unless a single block covers the whole padded array.  Tp % 8 == 0, so an
    # even bt is sufficient.
    need16 = jnp.dtype(out_dtype).itemsize == 2 or jnp.dtype(nobs.dtype).itemsize == 2
    if need16 and (bt * Tp) % 16 != 0 and pl.cdiv(B, bt) > 1:
        bt += 1
    B_pad = _round_up(B, bt)

    x = nobs
    if B_pad != B or Tp != T:
        x = jnp.pad(x, ((0, B_pad - B), (0, Tp - T), (0, 0)))
    x = x.reshape(B_pad * Tp, D)      # leading-dim collapse; no dtype cast here

    rows = bt * Tp
    grid = (B_pad // bt,)

    out = pl.pallas_call(
        _idm_kernel,
        grid=grid,
        in_specs=[pl.BlockSpec((rows, D), lambda i: (i, 0))]
                 + [pl.BlockSpec(w.shape, lambda i: (0, 0)) for w in weights],
        out_specs=pl.BlockSpec((rows, w_out), lambda i: (i, 0)),
        out_shape=jax.ShapeDtypeStruct((B_pad * Tp, w_out), jnp.dtype(out_dtype)),
        compiler_params=pltpu.CompilerParams(
            dimension_semantics=("parallel",),
            vmem_limit_bytes=48 * 1024 * 1024),
    )(x, *weights)

    out = out.reshape(B_pad, Tp, w_out)[:B, :T - 1]
    act = out[..., :A]
    z_pred = out[..., A:A + L]
    return act, z_pred


class IDMCotrainPolicy:
    """JAX/Pallas counterpart of IDM_Cotrain_Policy: weights folded once at init."""

    def __init__(self, params, *, compute_dtype=jnp.bfloat16,
                 out_dtype=jnp.bfloat16, target_rows=2048):
        self._prepared = prepare_idm_weights(params, compute_dtype=compute_dtype)
        self._out_dtype = out_dtype
        self._target_rows = target_rows

    def __call__(self, nobs):
        return idm_cotrain_forward(nobs, self._prepared,
                                   out_dtype=self._out_dtype,
                                   target_rows=self._target_rows)


# ---------------------------------------------------------------------------
# Deterministic parameter init (synthetic, no checkpoint loading).
# ---------------------------------------------------------------------------
def init_params(key, obs_dim, hidden, latent, action_dim):
    ks = jax.random.split(key, 6)
    s = lambda fan_in: 1.0 / jnp.sqrt(jnp.float32(fan_in))
    return {
        "w_e1": jax.random.normal(ks[0], (obs_dim, hidden), jnp.float32) * s(obs_dim),
        "b_e1": jnp.zeros((1, hidden), jnp.float32),
        "w_e2": jax.random.normal(ks[1], (hidden, latent), jnp.float32) * s(hidden),
        "b_e2": jnp.zeros((1, latent), jnp.float32),
        "koopman": jax.random.normal(ks[2], (latent, latent), jnp.float32) * s(latent),
        "w_a1": jax.random.normal(ks[3], (2 * latent, hidden), jnp.float32) * s(2 * latent),
        "b_a1": jnp.zeros((1, hidden), jnp.float32),
        "w_a2": jax.random.normal(ks[4], (hidden, action_dim), jnp.float32) * s(hidden),
        "b_a2": jnp.zeros((1, action_dim), jnp.float32),
    }


# Pure-JAX reference (unfused) for correctness checking.
def _ref_forward(nobs, p):
    def enc(x):
        h = jnp.maximum(x @ p["w_e1"] + p["b_e1"], 0.0)
        return h @ p["w_e2"] + p["b_e2"]
    o_t, o_tp1 = nobs[:, :-1], nobs[:, 1:]
    z_t, z_tp1 = enc(o_t), enc(o_tp1)
    z_pred = z_t @ p["koopman"]
    zc = jnp.concatenate([z_t, z_tp1], axis=-1)
    h = jnp.maximum(zc @ p["w_a1"] + p["b_a1"], 0.0)
    return jnp.tanh(h @ p["w_a2"] + p["b_a2"]), z_pred


if __name__ == "__main__":
    B, T, OBS_DIM = 2, 8, 32
    HIDDEN, LATENT, ACT_DIM = 64, 32, 8

    key = jax.random.PRNGKey(0)
    k_obs, k_par = jax.random.split(key)
    nobs = jax.random.normal(k_obs, (B, T, OBS_DIM), jnp.float32)
    params = init_params(k_par, OBS_DIM, HIDDEN, LATENT, ACT_DIM)

    act_ref, z_ref = _ref_forward(nobs, params)

    # Exactness path: f32 MXU operands, f32 output slab (tight check).
    prep32 = prepare_idm_weights(params, compute_dtype=jnp.float32)
    act, z_pred = idm_cotrain_forward(nobs, prep32, out_dtype=jnp.float32)
    jax.block_until_ready((act, z_pred))
    assert act.shape == (B, T - 1, ACT_DIM)
    assert z_pred.shape == (B, T - 1, LATENT)
    assert jnp.allclose(act, act_ref, atol=1e-4), "action mismatch (f32)"
    assert jnp.allclose(z_pred, z_ref, atol=1e-4), "z_pred mismatch (f32)"

    # Default perf config: bf16 MXU operands + bf16 output slab (all gens).
    policy = IDMCotrainPolicy(params)                      # fold weights once
    act16, z16 = policy(nobs)
    jax.block_until_ready((act16, z16))
    assert act16.shape == (B, T - 1, ACT_DIM)
    assert z16.shape == (B, T - 1, LATENT)
    assert jnp.allclose(act16.astype(jnp.float32), act_ref,
                        rtol=2e-2, atol=1e-1), "action mismatch (bf16)"
    assert jnp.allclose(z16.astype(jnp.float32), z_ref,
                        rtol=2e-2, atol=1e-1), "z_pred mismatch (bf16)"

    print("KERNEL_OK")
</pallas_src>

<mosaic_0001>
module attributes {stable_mosaic.version = 11 : i64} {
  func.func @_idm_kernel(%arg0: i32, %arg1: memref<16x32xf32, #tpu.memory_space<vmem>>, %arg2: memref<32x64xf32, #tpu.memory_space<vmem>>, %arg3: memref<1x64xf32, #tpu.memory_space<vmem>>, %arg4: memref<64x128xf32, #tpu.memory_space<vmem>>, %arg5: memref<1x128xf32, #tpu.memory_space<vmem>>, %arg6: memref<128x64xf32, #tpu.memory_space<vmem>>, %arg7: memref<128x64xf32, #tpu.memory_space<vmem>>, %arg8: memref<1x64xf32, #tpu.memory_space<vmem>>, %arg9: memref<64x128xf32, #tpu.memory_space<vmem>>, %arg10: memref<1x128xf32, #tpu.memory_space<vmem>>, %arg11: memref<16x128xf32, #tpu.memory_space<vmem>>) attributes {dimension_semantics = [#tpu.dimension_semantics<parallel>], iteration_bounds = array<i64: 1>, scalar_prefetch = 0 : i64, scratch_operands = 0 : i64, tpu.core_type = #tpu.core_type<tc>, window_params = [{transform_indices = @transform_0, window_bounds = array<i64: 16, 32>}, {pipeline_mode = #tpu.pipeline_mode<synchronous>, transform_indices = @transform_1, window_bounds = array<i64: 32, 64>}, {pipeline_mode = #tpu.pipeline_mode<synchronous>, transform_indices = @transform_2, window_bounds = array<i64: 1, 64>}, {pipeline_mode = #tpu.pipeline_mode<synchronous>, transform_indices = @transform_3, window_bounds = array<i64: 64, 128>}, {pipeline_mode = #tpu.pipeline_mode<synchronous>, transform_indices = @transform_4, window_bounds = array<i64: 1, 128>}, {pipeline_mode = #tpu.pipeline_mode<synchronous>, transform_indices = @transform_5, window_bounds = array<i64: 128, 64>}, {pipeline_mode = #tpu.pipeline_mode<synchronous>, transform_indices = @transform_6, window_bounds = array<i64: 128, 64>}, {pipeline_mode = #tpu.pipeline_mode<synchronous>, transform_indices = @transform_7, window_bounds = array<i64: 1, 64>}, {pipeline_mode = #tpu.pipeline_mode<synchronous>, transform_indices = @transform_8, window_bounds = array<i64: 64, 128>}, {pipeline_mode = #tpu.pipeline_mode<synchronous>, transform_indices = @transform_9, window_bounds = array<i64: 1, 128>}, {transform_indices = @transform_10, window_bounds = array<i64: 16, 128>}]} {
    %c0 = arith.constant 0 : index
    %c0_0 = arith.constant 0 : index
    %0 = vector.load %arg1[%c0, %c0_0] : memref<16x32xf32, #tpu.memory_space<vmem>>, vector<16x32xf32>
    %c0_1 = arith.constant 0 : index
    %c0_2 = arith.constant 0 : index
    %1 = vector.load %arg2[%c0_1, %c0_2] : memref<32x64xf32, #tpu.memory_space<vmem>>, vector<32x64xf32>
    %cst = arith.constant dense<0.000000e+00> : vector<16x64xf32>
    %2 = tpu.matmul %0, %1, %cst {dimension_numbers = #tpu.dot_dimension_numbers<[1], [0], [0], [1], [0, 0, 1, 1], [], []>} : vector<16x32xf32>, vector<32x64xf32>, vector<16x64xf32> -> vector<16x64xf32>
    %c0_3 = arith.constant 0 : index
    %c0_4 = arith.constant 0 : index
    %3 = vector.load %arg3[%c0_3, %c0_4] : memref<1x64xf32, #tpu.memory_space<vmem>>, vector<1x64xf32>
    %4 = vector.broadcast %3 : vector<1x64xf32> to vector<16x64xf32>
    %5 = arith.addf %2, %4 : vector<16x64xf32>
    %cst_5 = arith.constant 0.000000e+00 : f32
    %6 = vector.broadcast %cst_5 : f32 to vector<16x64xf32>
    %7 = arith.maximumf %5, %6 : vector<16x64xf32>
    %c0_6 = arith.constant 0 : index
    %c0_7 = arith.constant 0 : index
    %8 = vector.load %arg4[%c0_6, %c0_7] : memref<64x128xf32, #tpu.memory_space<vmem>>, vector<64x128xf32>
    %cst_8 = arith.constant dense<0.000000e+00> : vector<16x128xf32>
    %9 = tpu.matmul %7, %8, %cst_8 {dimension_numbers = #tpu.dot_dimension_numbers<[1], [0], [0], [1], [0, 0, 1, 1], [], []>} : vector<16x64xf32>, vector<64x128xf32>, vector<16x128xf32> -> vector<16x128xf32>
    %c0_9 = arith.constant 0 : index
    %c0_10 = arith.constant 0 : index
    %10 = vector.load %arg5[%c0_9, %c0_10] : memref<1x128xf32, #tpu.memory_space<vmem>>, vector<1x128xf32>
    %11 = vector.broadcast %10 : vector<1x128xf32> to vector<16x128xf32>
    %12 = arith.addf %9, %11 : vector<16x128xf32>
    %c0_11 = arith.constant 0 : index
    %c0_12 = arith.constant 0 : index
    %13 = vector.load %arg6[%c0_11, %c0_12] : memref<128x64xf32, #tpu.memory_space<vmem>>, vector<128x64xf32>
    %cst_13 = arith.constant dense<0.000000e+00> : vector<16x64xf32>
    %14 = tpu.matmul %12, %13, %cst_13 {dimension_numbers = #tpu.dot_dimension_numbers<[1], [0], [0], [1], [0, 0, 1, 1], [], []>} : vector<16x128xf32>, vector<128x64xf32>, vector<16x64xf32> -> vector<16x64xf32>
    %c0_14 = arith.constant 0 : index
    %c0_15 = arith.constant 0 : index
    %15 = vector.load %arg7[%c0_14, %c0_15] : memref<128x64xf32, #tpu.memory_space<vmem>>, vector<128x64xf32>
    %cst_16 = arith.constant dense<0.000000e+00> : vector<16x64xf32>
    %16 = tpu.matmul %12, %15, %cst_16 {dimension_numbers = #tpu.dot_dimension_numbers<[1], [0], [0], [1], [0, 0, 1, 1], [], []>} : vector<16x128xf32>, vector<128x64xf32>, vector<16x64xf32> -> vector<16x64xf32>
    %17 = vector.extract_strided_slice %16 {offsets = [1, 0], sizes = [15, 64], strides = [1, 1]} : vector<16x64xf32> to vector<15x64xf32>
    %18 = vector.extract_strided_slice %16 {offsets = [0, 0], sizes = [1, 64], strides = [1, 1]} : vector<16x64xf32> to vector<1x64xf32>
    %19 = tpu.concatenate %17, %18 in 0 : vector<15x64xf32>, vector<1x64xf32> -> vector<16x64xf32>
    %20 = arith.addf %14, %19 : vector<16x64xf32>
    %c0_17 = arith.constant 0 : index
    %c0_18 = arith.constant 0 : index
    %21 = vector.load %arg8[%c0_17, %c0_18] : memref<1x64xf32, #tpu.memory_space<vmem>>, vector<1x64xf32>
    %22 = vector.broadcast %21 : vector<1x64xf32> to vector<16x64xf32>
    %23 = arith.addf %20, %22 : vector<16x64xf32>
    %cst_19 = arith.constant 0.000000e+00 : f32
    %24 = vector.broadcast %cst_19 : f32 to vector<16x64xf32>
    %25 = arith.maximumf %23, %24 : vector<16x64xf32>
    %c0_20 = arith.constant 0 : index
    %c0_21 = arith.constant 0 : index
    %26 = vector.load %arg9[%c0_20, %c0_21] : memref<64x128xf32, #tpu.memory_space<vmem>>, vector<64x128xf32>
    %cst_22 = arith.constant dense<0.000000e+00> : vector<16x128xf32>
    %27 = tpu.matmul %25, %26, %cst_22 {dimension_numbers = #tpu.dot_dimension_numbers<[1], [0], [0], [1], [0, 0, 1, 1], [], []>} : vector<16x64xf32>, vector<64x128xf32>, vector<16x128xf32> -> vector<16x128xf32>
    %c0_23 = arith.constant 0 : index
    %c0_24 = arith.constant 0 : index
    %28 = vector.load %arg10[%c0_23, %c0_24] : memref<1x128xf32, #tpu.memory_space<vmem>>, vector<1x128xf32>
    %29 = vector.broadcast %28 : vector<1x128xf32> to vector<16x128xf32>
    %30 = arith.addf %27, %29 : vector<16x128xf32>
    %31 = math.tanh %30 : vector<16x128xf32>
    %32 = arith.addf %31, %12 : vector<16x128xf32>
    %c0_25 = arith.constant 0 : index
    %c0_26 = arith.constant 0 : index
    %33 = vector.load %arg11[%c0_25, %c0_26] : memref<16x128xf32, #tpu.memory_space<vmem>>, vector<16x128xf32>
    tpu.vector_store %arg11[%c0_25, %c0_26], %32 {strides = array<i32>} : memref<16x128xf32, #tpu.memory_space<vmem>>, vector<16x128xf32>,
    return
  }
  func.func @transform_0(%arg0: i32) -> (i32, i32) {
    %c0_i32 = arith.constant 0 : i32
    %c0_i32_0 = arith.constant 0 : i32
    return %arg0, %c0_i32 : i32, i32
  }
  func.func @transform_1(%arg0: i32) -> (i32, i32) {
    %c0_i32 = arith.constant 0 : i32
    %c0_i32_0 = arith.constant 0 : i32
    %c0_i32_1 = arith.constant 0 : i32
    return %c0_i32, %c0_i32_0 : i32, i32
  }
  func.func @transform_2(%arg0: i32) -> (i32, i32) {
    %c0_i32 = arith.constant 0 : i32
    %c0_i32_0 = arith.constant 0 : i32
    %c0_i32_1 = arith.constant 0 : i32
    return %c0_i32, %c0_i32_0 : i32, i32
  }
  func.func @transform_3(%arg0: i32) -> (i32, i32) {
    %c0_i32 = arith.constant 0 : i32
    %c0_i32_0 = arith.constant 0 : i32
    %c0_i32_1 = arith.constant 0 : i32
    return %c0_i32, %c0_i32_0 : i32, i32
  }
  func.func @transform_4(%arg0: i32) -> (i32, i32) {
    %c0_i32 = arith.constant 0 : i32
    %c0_i32_0 = arith.constant 0 : i32
    %c0_i32_1 = arith.constant 0 : i32
    return %c0_i32, %c0_i32_0 : i32, i32
  }
  func.func @transform_5(%arg0: i32) -> (i32, i32) {
    %c0_i32 = arith.constant 0 : i32
    %c0_i32_0 = arith.constant 0 : i32
    %c0_i32_1 = arith.constant 0 : i32
    return %c0_i32, %c0_i32_0 : i32, i32
  }
  func.func @transform_6(%arg0: i32) -> (i32, i32) {
    %c0_i32 = arith.constant 0 : i32
    %c0_i32_0 = arith.constant 0 : i32
    %c0_i32_1 = arith.constant 0 : i32
    return %c0_i32, %c0_i32_0 : i32, i32
  }
  func.func @transform_7(%arg0: i32) -> (i32, i32) {
    %c0_i32 = arith.constant 0 : i32
    %c0_i32_0 = arith.constant 0 : i32
    %c0_i32_1 = arith.constant 0 : i32
    return %c0_i32, %c0_i32_0 : i32, i32
  }
  func.func @transform_8(%arg0: i32) -> (i32, i32) {
    %c0_i32 = arith.constant 0 : i32
    %c0_i32_0 = arith.constant 0 : i32
    %c0_i32_1 = arith.constant 0 : i32
    return %c0_i32, %c0_i32_0 : i32, i32
  }
  func.func @transform_9(%arg0: i32) -> (i32, i32) {
    %c0_i32 = arith.constant 0 : i32
    %c0_i32_0 = arith.constant 0 : i32
    %c0_i32_1 = arith.constant 0 : i32
    return %c0_i32, %c0_i32_0 : i32, i32
  }
  func.func @transform_10(%arg0: i32) -> (i32, i32) {
    %c0_i32 = arith.constant 0 : i32
    %c0_i32_0 = arith.constant 0 : i32
    return %arg0, %c0_i32 : i32, i32
  }
}

</mosaic_0001>

<llo_original>
// kernel: tpu_custom_call.1
$region0: #{tpu_custom_call.1}
  #allocation0 [shape = 'u32[]', space=smem, size = 0x4, offset = 0x4, fixed_abs, tag = 'smem constant byte address 0x4 - core index']
  #allocation1 [shape = 'u32[144,128]{1,0:T(1,128)}', space=vmem, size = 0x12000, scoped, tag = 'internal scratch']
  %s0 = inlined_call_operand.vmem [shape: f32[16,32], index: 0, kind: input, shape index: {}]
  %s1 = inlined_call_operand.vmem [shape: f32[32,64], index: 1, kind: input, shape index: {}]
  %s2 = inlined_call_operand.vmem [shape: f32[1,64], index: 2, kind: input, shape index: {}]
  %s3 = inlined_call_operand.vmem [shape: f32[64,128], index: 3, kind: input, shape index: {}]
  %s4 = inlined_call_operand.vmem [shape: f32[1,128], index: 4, kind: input, shape index: {}]
  %s5 = inlined_call_operand.vmem [shape: f32[128,64], index: 5, kind: input, shape index: {}]
  %s6 = inlined_call_operand.vmem [shape: f32[128,64], index: 6, kind: input, shape index: {}]
  %s7 = inlined_call_operand.vmem [shape: f32[1,64], index: 7, kind: input, shape index: {}]
  %s8 = inlined_call_operand.vmem [shape: f32[64,128], index: 8, kind: input, shape index: {}]
  %s9 = inlined_call_operand.vmem [shape: f32[1,128], index: 9, kind: input, shape index: {}]
  %s10 = inlined_call_operand.hbm [shape: f32[16,128], index: 10, kind: output, shape index: {}]
  %s11 = sld [smem:[#allocation0]]
  $region50: #{tpu_custom_call.1} parent=0
    _
  %s13 = ssub.s32 1, %s11
  %s14 = scalar_select 0, %s13, %s11
  $region1: #{tpu_custom_call.1} parent=0
    #allocation2 [shape = 'u8[8192]{0}', space=vmem, size = 0x2000, scoped, tag = 'output window, operand 0, single buffered']
    #allocation3 [shape = 's32[1]{0}', space=sflag, size = 0x4, scoped, tag = 'scoped memory for tpu_custom_call.1']
    %15 = vsyncpa [#allocation3], 0
    // Predicated region
    $region2: #{tpu_custom_call.1} parent=1 // pred_check
      _
    $region3: #{tpu_custom_call.1} parent=1 // pred_check_branch
      %17 = sbr.rel (0) target = $region5
    $region4: #{tpu_custom_call.1} parent=1 // pred_region
      _
    $region5: #{tpu_custom_call.1} parent=1 // pred_fallthru
      _
    // Predicated region
    $region6: #{tpu_custom_call.1} parent=1 // pred_check
      _
    $region7: #{tpu_custom_call.1} parent=1 // pred_check_branch
      %19 = sbr.rel (0) target = $region9
    $region8: #{tpu_custom_call.1} parent=1 // pred_region
      _
    $region9: #{tpu_custom_call.1} parent=1 // pred_fallthru
      _
    // Predicated region
    $region10: #{tpu_custom_call.1} parent=1 // pred_check
      _
    $region11: #{tpu_custom_call.1} parent=1 // pred_check_branch
      %21 = sbr.rel (0) target = $region13
    $region12: #{tpu_custom_call.1} parent=1 // pred_region
      _
    $region13: #{tpu_custom_call.1} parent=1 // pred_fallthru
      _
    // Predicated region
    $region14: #{tpu_custom_call.1} parent=1 // pred_check
      _
    $region15: #{tpu_custom_call.1} parent=1 // pred_check_branch
      %23 = sbr.rel (0) target = $region17
    $region16: #{tpu_custom_call.1} parent=1 // pred_region
      _
    $region17: #{tpu_custom_call.1} parent=1 // pred_fallthru
      _
    // Predicated region
    $region18: #{tpu_custom_call.1} parent=1 // pred_check
      _
    $region19: #{tpu_custom_call.1} parent=1 // pred_check_branch
      %25 = sbr.rel (0) target = $region21
    $region20: #{tpu_custom_call.1} parent=1 // pred_region
      _
    $region21: #{tpu_custom_call.1} parent=1 // pred_fallthru
      _
    // Predicated region
    $region22: #{tpu_custom_call.1} parent=1 // pred_check
      _
    $region23: #{tpu_custom_call.1} parent=1 // pred_check_branch
      %27 = sbr.rel (0) target = $region25
    $region24: #{tpu_custom_call.1} parent=1 // pred_region
      _
    $region25: #{tpu_custom_call.1} parent=1 // pred_fallthru
      _
    // Predicated region
    $region26: #{tpu_custom_call.1} parent=1 // pred_check
      _
    $region27: #{tpu_custom_call.1} parent=1 // pred_check_branch
      %29 = sbr.rel (0) target = $region29
    $region28: #{tpu_custom_call.1} parent=1 // pred_region
      _
    $region29: #{tpu_custom_call.1} parent=1 // pred_fallthru
      _
    // Predicated region
    $region30: #{tpu_custom_call.1} parent=1 // pred_check
      _
    $region31: #{tpu_custom_call.1} parent=1 // pred_check_branch
      %31 = sbr.rel (0) target = $region33
    $region32: #{tpu_custom_call.1} parent=1 // pred_region
      _
    $region33: #{tpu_custom_call.1} parent=1 // pred_fallthru
      _
    // Predicated region
    $region34: #{tpu_custom_call.1} parent=1 // pred_check
      _
    $region35: #{tpu_custom_call.1} parent=1 // pred_check_branch
      %33 = sbr.rel (0) target = $region37
    $region36: #{tpu_custom_call.1} parent=1 // pred_region
      _
    $region37: #{tpu_custom_call.1} parent=1 // pred_fallthru
      _
    // Predicated region
    $region38: #{tpu_custom_call.1} parent=1 // pred_check
      _
    $region39: #{tpu_custom_call.1} parent=1 // pred_check_branch
      %35 = sbr.rel (0) target = $region41
    $region40: #{tpu_custom_call.1} parent=1 // pred_region
      _
    $region41: #{tpu_custom_call.1} parent=1 // pred_fallthru
      _
    %v36 = vld [vmem:[%s0] sm:$0xff]
    %v37 = vld [vmem:[%s0 + $0x8] sm:$0xff]
    %v38 = vld [vmem:[%s1] sm:$0xff]
    %v39 = vld [vmem:[%s1 + $0x8] sm:$0xff]
    %v40 = vld [vmem:[%s1 + $0x10] sm:$0xff]
    %v41 = vld [vmem:[%s1 + $0x18] sm:$0xff]
    %v42 = vld [vmem:[%s2] sm:$0x1]
    %v44 = vlaneseq
    %v45 = vshrl.u32 %v44, 7
    %v46 = vsub.s32 0, %v45
    %v47 = vrot.slane %v42, %v46
    %vm49 = vcmask 261120
    %v51 = vsel %vm49, %v36, 0
    %v54 = vsel %vm49, %v37, 0
    %56 = vmatprep.subr.mxu0 0.0
    %57 = vmatpush1.msra.mxu0 %v38
    %58 = vmatprep.subr.mxu0 0.0
    %59 = vmatpush1.msra.mxu0 %v39
    %60 = vmatprep.subr.mxu0 0.0
    %61 = vmatpush1.msra.mxu0 %v40
    %62 = vmatprep.subr.mxu0 0.0
    %63 = vmatpush1.msra.mxu0 %v41
    %64 = vmatprep.subr.mxu0 0.0
    %65 = vmatpush1.msra.mxu0 0.0
    %66 = vmatprep.subr.mxu0 0.0
    %67 = vmatpush1.msra.mxu0 0.0
    %68 = vmatprep.subr.mxu0 0.0
    %69 = vmatpush1.msra.mxu0 0.0
    %70 = vmatprep.subr.mxu0 0.0
    %71 = vmatpush1.msra.mxu0 0.0
    %72 = vmatprep.subr.mxu0 0.0
    %73 = vmatpush1.msra.mxu0 0.0
    %74 = vmatprep.subr.mxu0 0.0
    %75 = vmatpush1.msra.mxu0 0.0
    %76 = vmatprep.subr.mxu0 0.0
    %77 = vmatpush1.msra.mxu0 0.0
    %78 = vmatprep.subr.mxu0 0.0
    %79 = vmatpush1.msra.mxu0 0.0
    %80 = vmatprep.subr.mxu0 0.0
    %81 = vmatpush1.msra.mxu0 0.0
    %82 = vmatprep.subr.mxu0 0.0
    %83 = vmatpush1.msra.mxu0 0.0
    %84 = vmatprep.subr.mxu0 0.0
    %85 = vmatpush1.msra.mxu0 0.0
    %86 = vmatprep.subr.mxu0 0.0
    %87 = vmatpush1.msra.mxu0 0.0
    %88 = vmatprep.subr.mxu0 0.0
    %89 = vmatpush1.msra.mxu0 0.0
    %90 = vmatprep.subr.mxu0 0.0
    %91 = vmatpush1.msra.mxu0 0.0
    %92 = vmatprep.subr.mxu0 0.0
    %93 = vmatpush1.msra.mxu0 0.0
    %94 = vmatprep.subr.mxu0 0.0
    %95 = vmatpush1.msra.mxu0 0.0
    %96 = vmatprep.subr.mxu0 0.0
    %97 = vmatpush1.msra.mxu0 0.0
    %98 = vmatprep.subr.mxu0 0.0
    %99 = vmatpush1.msra.mxu0 0.0
    %100 = vmatprep.subr.mxu0 0.0
    %101 = vmatpush1.msra.mxu0 0.0
    %102 = vmatprep.subr.mxu0 0.0
    %103 = vmatpush1.msra.mxu0 0.0
    %104 = vmatprep.subr.mxu0 0.0
    %105 = vmatpush1.msra.mxu0 0.0
    %106 = vmatprep.subr.mxu0 0.0
    %107 = vmatpush1.msra.mxu0 0.0
    %108 = vmatprep.subr.mxu0 0.0
    %109 = vmatpush1.msra.mxu0 0.0
    %110 = vmatprep.subr.mxu0 0.0
    %111 = vmatpush1.msra.mxu0 0.0
    %112 = vmatprep.subr.mxu0 0.0
    %113 = vmatpush1.msra.mxu0 0.0
    %114 = vmatprep.subr.mxu0 0.0
    %115 = vmatpush1.msra.mxu0 0.0
    %116 = vmatprep.subr.mxu0 0.0
    %117 = vmatpush1.msra.mxu0 0.0
    %118 = vmatprep.subr.mxu0 0.0
    %119 = vmatpush1.msra.mxu0 0.0
    %120 = vmatprep.mubr.f32.mxu0 0.0
    %121 = vmatmul.mubr.f32.gmra.mrb[0].mxu0 %v51
    %v122 = vpop.f32.mrb[0].mxu0
    %v123 = vadd.f32 %v47, %v122
    %v124 = vpop.f32.mrb[0].mxu0
    %125 = vmatprep.mubr.f32.mxu0 0.0
    %126 = vmatmul.mubr.f32.gmra.mrb[0].mxu0 %v54
    %v127 = vpop.f32.mrb[0].mxu0
    %v128 = vadd.f32 %v47, %v127
    %v129 = vpop.f32.mrb[0].mxu0
    %130 = vdwg.mxu0
    %v131 = vmax.f32 %v123, 0.0
    %v132 = vmax.f32 %v128, 0.0
    %v133 = vld [vmem:[%s3] sm:$0xff]
    %v134 = vld [vmem:[%s3 + $0x8] sm:$0xff]
    %v135 = vld [vmem:[%s3 + $0x10] sm:$0xff]
    %v136 = vld [vmem:[%s3 + $0x18] sm:$0xff]
    %v137 = vld [vmem:[%s3 + $0x20] sm:$0xff]
    %v138 = vld [vmem:[%s3 + $0x28] sm:$0xff]
    %v139 = vld [vmem:[%s3 + $0x30] sm:$0xff]
    %v140 = vld [vmem:[%s3 + $0x38] sm:$0xff]
    %v141 = vld [vmem:[%s4] sm:$0x1]
    %v143 = vlaneseq
    %v144 = vshrl.u32 %v143, 7
    %v145 = vsub.s32 0, %v144
    %v146 = vrot.slane %v141, %v145
    %vm148 = vcmask 523264
    %v150 = vsel %vm148, %v131, 0
    %v153 = vsel %vm148, %v132, 0
    %155 = vmatprep.subr.mxu0 0.0
    %156 = vmatpush1.msra.mxu0 %v133
    %157 = vmatprep.subr.mxu0 0.0
    %158 = vmatpush1.msra.mxu0 %v134
    %159 = vmatprep.subr.mxu0 0.0
    %160 = vmatpush1.msra.mxu0 %v135
    %161 = vmatprep.subr.mxu0 0.0
    %162 = vmatpush1.msra.mxu0 %v136
    %163 = vmatprep.subr.mxu0 0.0
    %164 = vmatpush1.msra.mxu0 %v137
    %165 = vmatprep.subr.mxu0 0.0
    %166 = vmatpush1.msra.mxu0 %v138
    %167 = vmatprep.subr.mxu0 0.0
    %168 = vmatpush1.msra.mxu0 %v139
    %169 = vmatprep.subr.mxu0 0.0
    %170 = vmatpush1.msra.mxu0 %v140
    %171 = vmatprep.subr.mxu0 0.0
    %172 = vmatpush1.msra.mxu0 0.0
    %173 = vmatprep.subr.mxu0 0.0
    %174 = vmatpush1.msra.mxu0 0.0
    %175 = vmatprep.subr.mxu0 0.0
    %176 = vmatpush1.msra.mxu0 0.0
    %177 = vmatprep.subr.mxu0 0.0
    %178 = vmatpush1.msra.mxu0 0.0
    %179 = vmatprep.subr.mxu0 0.0
    %180 = vmatpush1.msra.mxu0 0.0
    %181 = vmatprep.subr.mxu0 0.0
    %182 = vmatpush1.msra.mxu0 0.0
    %183 = vmatprep.subr.mxu0 0.0
    %184 = vmatpush1.msra.mxu0 0.0
    %185 = vmatprep.subr.mxu0 0.0
    %186 = vmatpush1.msra.mxu0 0.0
    %187 = vmatprep.subr.mxu0 0.0
    %188 = vmatpush1.msra.mxu0 0.0
    %189 = vmatprep.subr.mxu0 0.0
    %190 = vmatpush1.msra.mxu0 0.0
    %191 = vmatprep.subr.mxu0 0.0
    %192 = vmatpush1.msra.mxu0 0.0
    %193 = vmatprep.subr.mxu0 0.0
    %194 = vmatpush1.msra.mxu0 0.0
    %195 = vmatprep.subr.mxu0 0.0
    %196 = vmatpush1.msra.mxu0 0.0
    %197 = vmatprep.subr.mxu0 0.0
    %198 = vmatpush1.msra.mxu0 0.0
    %199 = vmatprep.subr.mxu0 0.0
    %200 = vmatpush1.msra.mxu0 0.0
    %201 = vmatprep.subr.mxu0 0.0
    %202 = vmatpush1.msra.mxu0 0.0
    %203 = vmatprep.subr.mxu0 0.0
    %204 = vmatpush1.msra.mxu0 0.0
    %205 = vmatprep.subr.mxu0 0.0
    %206 = vmatpush1.msra.mxu0 0.0
    %207 = vmatprep.subr.mxu0 0.0
    %208 = vmatpush1.msra.mxu0 0.0
    %209 = vmatprep.subr.mxu0 0.0
    %210 = vmatpush1.msra.mxu0 0.0
    %211 = vmatprep.subr.mxu0 0.0
    %212 = vmatpush1.msra.mxu0 0.0
    %213 = vmatprep.subr.mxu0 0.0
    %214 = vmatpush1.msra.mxu0 0.0
    %215 = vmatprep.subr.mxu0 0.0
    %216 = vmatpush1.msra.mxu0 0.0
    %217 = vmatprep.subr.mxu0 0.0
    %218 = vmatpush1.msra.mxu0 0.0
    %219 = vmatprep.mubr.f32.mxu0 0.0
    %220 = vmatmul.mubr.f32.gmra.mrb[0].mxu0 %v150
    %v221 = vpop.f32.mrb[0].mxu0
    %v222 = vadd.f32 %v146, %v221
    %v223 = vpop.f32.mrb[0].mxu0
    %224 = vmatprep.mubr.f32.mxu0 0.0
    %225 = vmatmul.mubr.f32.gmra.mrb[0].mxu0 %v153
    %v226 = vpop.f32.mrb[0].mxu0
    %v227 = vadd.f32 %v146, %v226
    %v228 = vpop.f32.mrb[0].mxu0
    %229 = vdwg.mxu0
    %v230 = vld [vmem:[%s5] sm:$0xff]
    %v231 = vld [vmem:[%s5 + $0x8] sm:$0xff]
    %v232 = vld [vmem:[%s5 + $0x10] sm:$0xff]
    %v233 = vld [vmem:[%s5 + $0x18] sm:$0xff]
    %v234 = vld [vmem:[%s5 + $0x20] sm:$0xff]
    %v235 = vld [vmem:[%s5 + $0x28] sm:$0xff]
    %v236 = vld [vmem:[%s5 + $0x30] sm:$0xff]
    %v237 = vld [vmem:[%s5 + $0x38] sm:$0xff]
    %v238 = vld [vmem:[%s5 + $0x40] sm:$0xff]
    %v239 = vld [vmem:[%s5 + $0x48] sm:$0xff]
    %v240 = vld [vmem:[%s5 + $0x50] sm:$0xff]
    %v241 = vld [vmem:[%s5 + $0x58] sm:$0xff]
    %v242 = vld [vmem:[%s5 + $0x60] sm:$0xff]
    %v243 = vld [vmem:[%s5 + $0x68] sm:$0xff]
    %v244 = vld [vmem:[%s5 + $0x70] sm:$0xff]
    %v245 = vld [vmem:[%s5 + $0x78] sm:$0xff]
    %v246 = vld [vmem:[%s6] sm:$0xff]
    %v247 = vld [vmem:[%s6 + $0x8] sm:$0xff]
    %v248 = vld [vmem:[%s6 + $0x10] sm:$0xff]
    %v249 = vld [vmem:[%s6 + $0x18] sm:$0xff]
    %v250 = vld [vmem:[%s6 + $0x20] sm:$0xff]
    %v251 = vld [vmem:[%s6 + $0x28] sm:$0xff]
    %v252 = vld [vmem:[%s6 + $0x30] sm:$0xff]
    %v253 = vld [vmem:[%s6 + $0x38] sm:$0xff]
    %v254 = vld [vmem:[%s6 + $0x40] sm:$0xff]
    %v255 = vld [vmem:[%s6 + $0x48] sm:$0xff]
    %v256 = vld [vmem:[%s6 + $0x50] sm:$0xff]
    %v257 = vld [vmem:[%s6 + $0x58] sm:$0xff]
    %v258 = vld [vmem:[%s6 + $0x60] sm:$0xff]
    %v259 = vld [vmem:[%s6 + $0x68] sm:$0xff]
    %v260 = vld [vmem:[%s6 + $0x70] sm:$0xff]
    %v261 = vld [vmem:[%s6 + $0x78] sm:$0xff]
    %262 = vmatprep.subr.mxu0 0.0
    %263 = vmatpush1.msra.mxu0 %v246
    %264 = vmatprep.subr.mxu0 0.0
    %265 = vmatpush1.msra.mxu0 %v247
    %266 = vmatprep.subr.mxu0 0.0
    %267 = vmatpush1.msra.mxu0 %v248
    %268 = vmatprep.subr.mxu0 0.0
    %269 = vmatpush1.msra.mxu0 %v249
    %270 = vmatprep.subr.mxu0 0.0
    %271 = vmatpush1.msra.mxu0 %v250
    %272 = vmatprep.subr.mxu0 0.0
    %273 = vmatpush1.msra.mxu0 %v251
    %274 = vmatprep.subr.mxu0 0.0
    %275 = vmatpush1.msra.mxu0 %v252
    %276 = vmatprep.subr.mxu0 0.0
    %277 = vmatpush1.msra.mxu0 %v253
    %278 = vmatprep.subr.mxu0 0.0
    %279 = vmatpush1.msra.mxu0 %v254
    %280 = vmatprep.subr.mxu0 0.0
    %281 = vmatpush1.msra.mxu0 %v255
    %282 = vmatprep.subr.mxu0 0.0
    %283 = vmatpush1.msra.mxu0 %v256
    %284 = vmatprep.subr.mxu0 0.0
    %285 = vmatpush1.msra.mxu0 %v257
    %286 = vmatprep.subr.mxu0 0.0
    %287 = vmatpush1.msra.mxu0 %v258
    %288 = vmatprep.subr.mxu0 0.0
    %289 = vmatpush1.msra.mxu0 %v259
    %290 = vmatprep.subr.mxu0 0.0
    %291 = vmatpush1.msra.mxu0 %v260
    %292 = vmatprep.subr.mxu0 0.0
    %293 = vmatpush1.msra.mxu0 %v261
    %294 = vmatprep.subr.mxu0 0.0
    %295 = vmatpush1.msra.mxu0 0.0
    %296 = vmatprep.subr.mxu0 0.0
    %297 = vmatpush1.msra.mxu0 0.0
    %298 = vmatprep.subr.mxu0 0.0
    %299 = vmatpush1.msra.mxu0 0.0
    %300 = vmatprep.subr.mxu0 0.0
    %301 = vmatpush1.msra.mxu0 0.0
    %302 = vmatprep.subr.mxu0 0.0
    %303 = vmatpush1.msra.mxu0 0.0
    %304 = vmatprep.subr.mxu0 0.0
    %305 = vmatpush1.msra.mxu0 0.0
    %306 = vmatprep.subr.mxu0 0.0
    %307 = vmatpush1.msra.mxu0 0.0
    %308 = vmatprep.subr.mxu0 0.0
    %309 = vmatpush1.msra.mxu0 0.0
    %310 = vmatprep.subr.mxu0 0.0
    %311 = vmatpush1.msra.mxu0 0.0
    %312 = vmatprep.subr.mxu0 0.0
    %313 = vmatpush1.msra.mxu0 0.0
    %314 = vmatprep.subr.mxu0 0.0
    %315 = vmatpush1.msra.mxu0 0.0
    %316 = vmatprep.subr.mxu0 0.0
    %317 = vmatpush1.msra.mxu0 0.0
    %318 = vmatprep.subr.mxu0 0.0
    %319 = vmatpush1.msra.mxu0 0.0
    %320 = vmatprep.subr.mxu0 0.0
    %321 = vmatpush1.msra.mxu0 0.0
    %322 = vmatprep.subr.mxu0 0.0
    %323 = vmatpush1.msra.mxu0 0.0
    %324 = vmatprep.subr.mxu0 0.0
    %325 = vmatpush1.msra.mxu0 0.0
    %326 = vmatprep.mubr.f32.mxu0 0.0
    %327 = vmatmul.mubr.f32.gmra.mrb[0].mxu0 %v222
    %v328 = vpop.f32.mrb[0].mxu0
    %v329 = vadd.f32 0.0, %v328
    %v330 = vpop.f32.mrb[0].mxu0
    %331 = vmatprep.mubr.f32.mxu0 0.0
    %332 = vmatmul.mubr.f32.gmra.mrb[0].mxu0 %v227
    %v333 = vpop.f32.mrb[0].mxu0
    %v334 = vadd.f32 0.0, %v333
    %v335 = vpop.f32.mrb[0].mxu0
    %336 = vdwg.mxu0
    %vm339 = vcmask 1046528
    %v340 = vrot.slane %v329, 1
    %v341 = vrot.slane %v334, 1
    %v342 = vsel %vm339, %v340, %v341
    %v346 = vsel %vm339, %v341, %v340
    %347 = vmatprep.subr.mxu0 0.0
    %348 = vmatpush1.msra.mxu0 %v230
    %349 = vmatprep.subr.mxu0 0.0
    %350 = vmatpush1.msra.mxu0 %v231
    %351 = vmatprep.subr.mxu0 0.0
    %352 = vmatpush1.msra.mxu0 %v232
    %353 = vmatprep.subr.mxu0 0.0
    %354 = vmatpush1.msra.mxu0 %v233
    %355 = vmatprep.subr.mxu0 0.0
    %356 = vmatpush1.msra.mxu0 %v234
    %357 = vmatprep.subr.mxu0 0.0
    %358 = vmatpush1.msra.mxu0 %v235
    %359 = vmatprep.subr.mxu0 0.0
    %360 = vmatpush1.msra.mxu0 %v236
    %361 = vmatprep.subr.mxu0 0.0
    %362 = vmatpush1.msra.mxu0 %v237
    %363 = vmatprep.subr.mxu0 0.0
    %364 = vmatpush1.msra.mxu0 %v238
    %365 = vmatprep.subr.mxu0 0.0
    %366 = vmatpush1.msra.mxu0 %v239
    %367 = vmatprep.subr.mxu0 0.0
    %368 = vmatpush1.msra.mxu0 %v240
    %369 = vmatprep.subr.mxu0 0.0
    %370 = vmatpush1.msra.mxu0 %v241
    %371 = vmatprep.subr.mxu0 0.0
    %372 = vmatpush1.msra.mxu0 %v242
    %373 = vmatprep.subr.mxu0 0.0
    %374 = vmatpush1.msra.mxu0 %v243
    %375 = vmatprep.subr.mxu0 0.0
    %376 = vmatpush1.msra.mxu0 %v244
    %377 = vmatprep.subr.mxu0 0.0
    %378 = vmatpush1.msra.mxu0 %v245
    %379 = vmatprep.subr.mxu0 0.0
    %380 = vmatpush1.msra.mxu0 0.0
    %381 = vmatprep.subr.mxu0 0.0
    %382 = vmatpush1.msra.mxu0 0.0
    %383 = vmatprep.subr.mxu0 0.0
    %384 = vmatpush1.msra.mxu0 0.0
    %385 = vmatprep.subr.mxu0 0.0
    %386 = vmatpush1.msra.mxu0 0.0
    %387 = vmatprep.subr.mxu0 0.0
    %388 = vmatpush1.msra.mxu0 0.0
    %389 = vmatprep.subr.mxu0 0.0
    %390 = vmatpush1.msra.mxu0 0.0
    %391 = vmatprep.subr.mxu0 0.0
    %392 = vmatpush1.msra.mxu0 0.0
    %393 = vmatprep.subr.mxu0 0.0
    %394 = vmatpush1.msra.mxu0 0.0
    %395 = vmatprep.subr.mxu0 0.0
    %396 = vmatpush1.msra.mxu0 0.0
    %397 = vmatprep.subr.mxu0 0.0
    %398 = vmatpush1.msra.mxu0 0.0
    %399 = vmatprep.subr.mxu0 0.0
    %400 = vmatpush1.msra.mxu0 0.0
    %401 = vmatprep.subr.mxu0 0.0
    %402 = vmatpush1.msra.mxu0 0.0
    %403 = vmatprep.subr.mxu0 0.0
    %404 = vmatpush1.msra.mxu0 0.0
    %405 = vmatprep.subr.mxu0 0.0
    %406 = vmatpush1.msra.mxu0 0.0
    %407 = vmatprep.subr.mxu0 0.0
    %408 = vmatpush1.msra.mxu0 0.0
    %409 = vmatprep.subr.mxu0 0.0
    %410 = vmatpush1.msra.mxu0 0.0
    %411 = vmatprep.mubr.f32.mxu0 0.0
    %412 = vmatmul.mubr.f32.gmra.mrb[0].mxu0 %v222
    %v413 = vpop.f32.mrb[0].mxu0
    %v414 = vadd.f32 %v342, %v413
    %v415 = vpop.f32.mrb[0].mxu0
    %416 = vmatprep.mubr.f32.mxu0 0.0
    %417 = vmatmul.mubr.f32.gmra.mrb[0].mxu0 %v227
    %v418 = vpop.f32.mrb[0].mxu0
    %v419 = vadd.f32 %v346, %v418
    %v420 = vpop.f32.mrb[0].mxu0
    %421 = vdwg.mxu0
    %v422 = vld [vmem:[%s7] sm:$0x1]
    %v424 = vlaneseq
    %v425 = vshrl.u32 %v424, 7
    %v426 = vsub.s32 0, %v425
    %v427 = vrot.slane %v422, %v426
    %v429 = vadd.f32 %v414, %v427
    %v430 = vadd.f32 %v419, %v427
    %v431 = vmax.f32 %v429, 0.0
    %v432 = vmax.f32 %v430, 0.0
    %v433 = vld [vmem:[%s8] sm:$0xff]
    %v434 = vld [vmem:[%s8 + $0x8] sm:$0xff]
    %v435 = vld [vmem:[%s8 + $0x10] sm:$0xff]
    %v436 = vld [vmem:[%s8 + $0x18] sm:$0xff]
    %v437 = vld [vmem:[%s8 + $0x20] sm:$0xff]
    %v438 = vld [vmem:[%s8 + $0x28] sm:$0xff]
    %v439 = vld [vmem:[%s8 + $0x30] sm:$0xff]
    %v440 = vld [vmem:[%s8 + $0x38] sm:$0xff]
    %v441 = vld [vmem:[%s9] sm:$0x1]
    %v443 = vlaneseq
    %v444 = vshrl.u32 %v443, 7
    %v445 = vsub.s32 0, %v444
    %v446 = vrot.slane %v441, %v445
    %v449 = vsel %vm148, %v431, 0
    %v452 = vsel %vm148, %v432, 0
    %454 = vmatprep.subr.mxu0 0.0
    %455 = vmatpush1.msra.mxu0 %v433
    %456 = vmatprep.subr.mxu0 0.0
    %457 = vmatpush1.msra.mxu0 %v434
    %458 = vmatprep.subr.mxu0 0.0
    %459 = vmatpush1.msra.mxu0 %v435
    %460 = vmatprep.subr.mxu0 0.0
    %461 = vmatpush1.msra.mxu0 %v436
    %462 = vmatprep.subr.mxu0 0.0
    %463 = vmatpush1.msra.mxu0 %v437
    %464 = vmatprep.subr.mxu0 0.0
    %465 = vmatpush1.msra.mxu0 %v438
    %466 = vmatprep.subr.mxu0 0.0
    %467 = vmatpush1.msra.mxu0 %v439
    %468 = vmatprep.subr.mxu0 0.0
    %469 = vmatpush1.msra.mxu0 %v440
    %470 = vmatprep.subr.mxu0 0.0
    %471 = vmatpush1.msra.mxu0 0.0
    %472 = vmatprep.subr.mxu0 0.0
    %473 = vmatpush1.msra.mxu0 0.0
    %474 = vmatprep.subr.mxu0 0.0
    %475 = vmatpush1.msra.mxu0 0.0
    %476 = vmatprep.subr.mxu0 0.0
    %477 = vmatpush1.msra.mxu0 0.0
    %478 = vmatprep.subr.mxu0 0.0
    %479 = vmatpush1.msra.mxu0 0.0
    %480 = vmatprep.subr.mxu0 0.0
    %481 = vmatpush1.msra.mxu0 0.0
    %482 = vmatprep.subr.mxu0 0.0
    %483 = vmatpush1.msra.mxu0 0.0
    %484 = vmatprep.subr.mxu0 0.0
    %485 = vmatpush1.msra.mxu0 0.0
    %486 = vmatprep.subr.mxu0 0.0
    %487 = vmatpush1.msra.mxu0 0.0
    %488 = vmatprep.subr.mxu0 0.0
    %489 = vmatpush1.msra.mxu0 0.0
    %490 = vmatprep.subr.mxu0 0.0
    %491 = vmatpush1.msra.mxu0 0.0
    %492 = vmatprep.subr.mxu0 0.0
    %493 = vmatpush1.msra.mxu0 0.0
    %494 = vmatprep.subr.mxu0 0.0
    %495 = vmatpush1.msra.mxu0 0.0
    %496 = vmatprep.subr.mxu0 0.0
    %497 = vmatpush1.msra.mxu0 0.0
    %498 = vmatprep.subr.mxu0 0.0
    %499 = vmatpush1.msra.mxu0 0.0
    %500 = vmatprep.subr.mxu0 0.0
    %501 = vmatpush1.msra.mxu0 0.0
    %502 = vmatprep.subr.mxu0 0.0
    %503 = vmatpush1.msra.mxu0 0.0
    %504 = vmatprep.subr.mxu0 0.0
    %505 = vmatpush1.msra.mxu0 0.0
    %506 = vmatprep.subr.mxu0 0.0
    %507 = vmatpush1.msra.mxu0 0.0
    %508 = vmatprep.subr.mxu0 0.0
    %509 = vmatpush1.msra.mxu0 0.0
    %510 = vmatprep.subr.mxu0 0.0
    %511 = vmatpush1.msra.mxu0 0.0
    %512 = vmatprep.subr.mxu0 0.0
    %513 = vmatpush1.msra.mxu0 0.0
    %514 = vmatprep.subr.mxu0 0.0
    %515 = vmatpush1.msra.mxu0 0.0
    %516 = vmatprep.subr.mxu0 0.0
    %517 = vmatpush1.msra.mxu0 0.0
    %518 = vmatprep.mubr.f32.mxu0 0.0
    %519 = vmatmul.mubr.f32.gmra.mrb[0].mxu0 %v449
    %v520 = vpop.f32.mrb[0].mxu0
    %v521 = vadd.f32 %v446, %v520
    %v522 = vpop.f32.mrb[0].mxu0
    %523 = vmatprep.mubr.f32.mxu0 0.0
    %524 = vmatmul.mubr.f32.gmra.mrb[0].mxu0 %v452
    %v525 = vpop.f32.mrb[0].mxu0
    %v526 = vadd.f32 %v446, %v525
    %v527 = vpop.f32.mrb[0].mxu0
    %528 = vdwg.mxu0
    %v529 = vtanh.pop %v521
    %v530 = vtanh.pop %v526
    %v531 = vadd.f32 %v529, %v222
    %v532 = vadd.f32 %v530, %v227
    %533 = vst [vmem:[#allocation2] sm:$0xff] %v531
    %534 = vst [vmem:[#allocation2 + $0x8] sm:$0xff] %v532
    // Predicated region
    $region42: #{tpu_custom_call.1} parent=1 // pred_check
      _
    $region43: #{tpu_custom_call.1} parent=1 // pred_check_branch
      %536 = sbr.rel (0) target = $region45
    $region44: #{tpu_custom_call.1} parent=1 // pred_region
      %s538 = ssub.s32 256, 256
      %539 = vsyncadd [#allocation3], %s538
      %s540 = sshll.u32 [#allocation2], 4
      %s541 = int_to_ptr.vmem [resolvable:$true] %s540
      %546 = dma.vmem_to_hbm [thread:$0]  %s541, 256, %s10, [#allocation3], 128, 128, 8
    $region45: #{tpu_custom_call.1} parent=1 // pred_fallthru
      _
    // Predicated region
    $region46: #{tpu_custom_call.1} parent=1 // pred_check
      _
    $region47: #{tpu_custom_call.1} parent=1 // pred_check_branch
      %548 = sbr.rel (0) target = $region49
    $region48: #{tpu_custom_call.1} parent=1 // pred_region
      %549 = dma.done [#allocation3], 256
    $region49: #{tpu_custom_call.1} parent=1 // pred_fallthru
      _
    %550 = vsyncpa [#allocation3], 1

</llo_original>
